<compile_context>
chip_gen: v7x
topology: tpu7x:2x2x1
jax: 0.10.0
libtpu: 0.0.40
codegen_flags: <defaults>
</compile_context>

<pallas_src>
import jax
import jax.numpy as jnp
from jax import lax
from jax.experimental import pallas as pl
from jax.experimental.pallas import tpu as pltpu


# ---------------------------------------------------------------------------
# Pass 1: per-(batch, split) partial second-moment matrix
#   M_part[b, s] = sum_{n in split s} phi[:, n] (outer) g[:, n]
# The n-tile axis is the last ("arbitrary") grid axis; the tiny (ch, ch)
# accumulator stays resident in VMEM across it.
# ---------------------------------------------------------------------------
def _make_moment_kernel(*, fused, n_valid, tn, tiles_per_split, mask_tail):

    def _accumulate(phi_t, g_t, m_ref):
        si = pl.program_id(1)
        ti = pl.program_id(2)

        if mask_tail:
            # Padded x columns are zero, but the projection biases are not:
            # zero the padded columns of g so they contribute 0 to M.
            off = (si * tiles_per_split + ti) * tn
            col = lax.broadcasted_iota(jnp.int32, g_t.shape, 1) + off
            g_t = jnp.where(col < n_valid, g_t, 0.0)

        @pl.when(ti == 0)
        def _():
            m_ref[0] = jnp.zeros_like(m_ref[0])

        # M += phi_t @ g_t^T  (contract over the N-tile axis), bf16 -> f32 acc.
        m_ref[0] = m_ref[0] + lax.dot_general(
            phi_t.astype(jnp.bfloat16), g_t.astype(jnp.bfloat16),
            (((1,), (1,)), ((), ())),
            preferred_element_type=jnp.float32)

    if fused:
        # ch is 8-aligned: fused phi|g projection, then an aligned sublane split.
        def kernel(x_ref, wpg_ref, bpg_ref, m_ref):
            x = x_ref[0].astype(jnp.bfloat16)                     # (C, TN)
            proj = lax.dot_general(
                wpg_ref[...], x, (((0,), (0,)), ((), ())),
                preferred_element_type=jnp.float32) + bpg_ref[...]
            ch = proj.shape[0] // 2
            _accumulate(proj[:ch], proj[ch:], m_ref)
    else:
        # ch not 8-aligned: keep w2/w3 separate (avoids a misaligned sublane
        # slice / relayout of the fused projection).
        def kernel(x_ref, w2_ref, b2_ref, w3_ref, b3_ref, m_ref):
            x = x_ref[0].astype(jnp.bfloat16)                     # (C, TN)
            phi_t = lax.dot_general(
                w2_ref[...], x, (((0,), (0,)), ((), ())),
                preferred_element_type=jnp.float32) + b2_ref[...]
            g_t = lax.dot_general(
                w3_ref[...], x, (((0,), (0,)), ((), ())),
                preferred_element_type=jnp.float32) + b3_ref[...]
            _accumulate(phi_t, g_t, m_ref)

    return kernel


# ---------------------------------------------------------------------------
# Pass 2: out^T = W_eff[b]^T @ x^T + b_eff[b] + x^T   (single matmul per tile)
# ---------------------------------------------------------------------------
def _apply_kernel(x_ref, weff_ref, beff_ref, o_ref):
    # x_ref: (1, C, TN) f32   weff_ref: (1, C, C) bf16   beff_ref: (1, C, 1) f32
    x = x_ref[0]                                                  # (C, TN)
    out_t = lax.dot_general(
        weff_ref[0], x.astype(jnp.bfloat16), (((0,), (0,)), ((), ())),
        preferred_element_type=jnp.float32)                       # (C, TN)
    o_ref[0] = (out_t + beff_ref[0] + x).astype(o_ref.dtype)


# ---------------------------------------------------------------------------
# Host-side helpers
# ---------------------------------------------------------------------------
def _tpu_vmem_capacity():
    try:
        return int(pltpu.get_tpu_info().vmem_capacity_bytes)
    except Exception:
        return 64 << 20          # conservative (v7x-sized) fallback


def _pick_tile(n_pad, c, vmem_cap):
    """Largest 128-multiple tile of (padded) N dividing it, with a
    generation-aware per-block byte target (bigger on 128 MiB-VMEM parts)."""
    target = (8 << 20) if vmem_cap >= (96 << 20) else (4 << 20)
    max_tile = max(128, (target // (c * 4)) // 128 * 128)
    tn = 128
    while tn * 2 <= min(n_pad, max_tile) and n_pad % (tn * 2) == 0:
        tn *= 2
    return tn


def _vmem_limit(block_bytes_list, vmem_cap):
    """VMEM request from actual per-step residency (double-buffered) with a
    cap that leaves headroom on v7x (~48 MiB of its 64 MiB)."""
    need = 2 * sum(block_bytes_list) + (2 << 20)
    cap = (vmem_cap * 3) // 4
    return int(max(16 << 20, min(need, cap)))


def nlnn_dot(x_nchw, params, *, tile_n=None, n_splits=None):
    bs, c, h, w = x_nchw.shape
    ch = c // 2
    n = h * w
    w1, b1, w2, b2, w3, b3, w4, b4 = params

    vmem_cap = _tpu_vmem_capacity()

    # NCHW -> (bs, C, N): free reshape; zero-pad N to a multiple of 128 so all
    # passes have 128-aligned lane extents (dense, unmasked vector stores).
    n_pad = ((n + 127) // 128) * 128
    x_cn = x_nchw.reshape(bs, c, n)
    if n_pad != n:
        x_cn = jnp.pad(x_cn, ((0, 0), (0, 0), (0, n_pad - n)))

    tn = tile_n if tile_n is not None else _pick_tile(n_pad, c, vmem_cap)
    assert n_pad % tn == 0 and tn % 128 == 0
    n_tiles = n_pad // tn

    # Split the pass-1 reduction into partial accumulators so both v7x
    # TensorCores are covered even when bs alone cannot fill them.
    if n_splits is None:
        n_splits = 2 if (n_tiles % 2 == 0 and n_tiles >= 2) else 1
    tiles_per_split = n_tiles // n_splits

    fused = (ch % 8 == 0) and ch >= 8
    x_block = c * tn * 4

    moment_kernel = _make_moment_kernel(
        fused=fused, n_valid=n, tn=tn, tiles_per_split=tiles_per_split,
        mask_tail=(n_pad != n))

    if fused:
        wpg = jnp.concatenate([w2, w3], axis=1).astype(jnp.bfloat16)   # (C, 2ch)
        bpg = jnp.concatenate([b2, b3], axis=1).reshape(2 * ch, 1)     # (2ch, 1)
        p1_inputs = (x_cn, wpg, bpg)
        p1_in_specs = [
            pl.BlockSpec((1, c, tn),
                         lambda b, s, i: (b, 0, s * tiles_per_split + i)),
            pl.BlockSpec((c, 2 * ch), lambda b, s, i: (0, 0)),
            pl.BlockSpec((2 * ch, 1), lambda b, s, i: (0, 0)),
        ]
        p1_w_bytes = c * 2 * ch * 2 + 2 * ch * 4
    else:
        p1_inputs = (x_cn,
                     w2.astype(jnp.bfloat16), b2.reshape(ch, 1),
                     w3.astype(jnp.bfloat16), b3.reshape(ch, 1))
        p1_in_specs = [
            pl.BlockSpec((1, c, tn),
                         lambda b, s, i: (b, 0, s * tiles_per_split + i)),
            pl.BlockSpec((c, ch), lambda b, s, i: (0, 0)),
            pl.BlockSpec((ch, 1), lambda b, s, i: (0, 0)),
            pl.BlockSpec((c, ch), lambda b, s, i: (0, 0)),
            pl.BlockSpec((ch, 1), lambda b, s, i: (0, 0)),
        ]
        p1_w_bytes = 2 * (c * ch * 2 + ch * 4)

    # Pass 1: partial moments, shape (bs*n_splits, ch, ch).
    m_part = pl.pallas_call(
        moment_kernel,
        out_shape=jax.ShapeDtypeStruct((bs * n_splits, ch, ch), jnp.float32),
        grid_spec=pltpu.PrefetchScalarGridSpec(
            num_scalar_prefetch=0,
            grid=(bs, n_splits, tiles_per_split),
            in_specs=p1_in_specs,
            out_specs=pl.BlockSpec((1, ch, ch),
                                   lambda b, s, i: (b * n_splits + s, 0, 0)),
        ),
        compiler_params=pltpu.CompilerParams(
            dimension_semantics=("parallel", "parallel", "arbitrary"),
            vmem_limit_bytes=_vmem_limit(
                [x_block, p1_w_bytes, ch * ch * 4], vmem_cap)),
    )(*p1_inputs)

    # Tiny per-batch precompute (O(C^3) per batch, negligible): the 1/N 'dot'
    # scale is folded here, removing any epilogue rescale from pass 1.
    HI = lax.Precision.HIGHEST
    m = m_part.reshape(bs, n_splits, ch, ch).sum(axis=1) * (1.0 / n)
    w_eff = jnp.einsum("cd,bde,ef->bcf", w1, m, w4, precision=HI)      # (bs,C,C)
    b_eff = (jnp.einsum("d,bde,ef->bf", b1[0], m, w4, precision=HI)
             + b4[0]).reshape(bs, c, 1)                                # (bs,C,1)
    w_eff = w_eff.astype(jnp.bfloat16)

    # Pass 2: out = x @ W_eff + b_eff + x, tiled over (batch, N-tiles).
    out_cn = pl.pallas_call(
        _apply_kernel,
        out_shape=jax.ShapeDtypeStruct((bs, c, n_pad), x_cn.dtype),
        grid_spec=pltpu.PrefetchScalarGridSpec(
            num_scalar_prefetch=0,
            grid=(bs, n_tiles),
            in_specs=[
                pl.BlockSpec((1, c, tn), lambda b, i: (b, 0, i)),
                pl.BlockSpec((1, c, c), lambda b, i: (b, 0, 0)),
                pl.BlockSpec((1, c, 1), lambda b, i: (b, 0, 0)),
            ],
            out_specs=pl.BlockSpec((1, c, tn), lambda b, i: (b, 0, i)),
        ),
        compiler_params=pltpu.CompilerParams(
            dimension_semantics=("parallel", "parallel"),
            vmem_limit_bytes=_vmem_limit(
                [x_block, x_block, c * c * 2 + c * 4], vmem_cap)),
    )(x_cn, w_eff, b_eff)

    if n_pad != n:
        out_cn = out_cn[:, :, :n]
    return out_cn.reshape(bs, c, h, w)


def init_params(key, c):
    """Deterministic synthetic weights; 1x1 conv weights stored as (Cin, Cout)."""
    ch = c // 2
    ks = jax.random.split(key, 8)

    def wmat(k, cin, cout):
        return jax.random.normal(k, (cin, cout), jnp.float32) / jnp.sqrt(cin)

    def bvec(k, cout):
        return 0.01 * jax.random.normal(k, (1, cout), jnp.float32)

    return (wmat(ks[0], c, ch), bvec(ks[1], ch),
            wmat(ks[2], c, ch), bvec(ks[3], ch),
            wmat(ks[4], c, ch), bvec(ks[5], ch),
            wmat(ks[6], ch, c), bvec(ks[7], c))


def nlnn_dot_ref(x_nchw, params):
    """Pure-JAX reference of the intended 'dot'-mode non-local block."""
    HI = lax.Precision.HIGHEST
    bs, c, h, w = x_nchw.shape
    n = h * w
    x_flat = jnp.transpose(x_nchw.reshape(bs, c, n), (0, 2, 1))
    w1, b1, w2, b2, w3, b3, w4, b4 = params
    theta = jnp.einsum("bnc,cd->bnd", x_flat, w1, precision=HI) + b1
    phi = jnp.einsum("bnc,cd->bnd", x_flat, w2, precision=HI) + b2
    g = jnp.einsum("bnc,cd->bnd", x_flat, w3, precision=HI) + b3
    attn = jnp.einsum("bnd,bmd->bnm", theta, phi, precision=HI) / n
    y = jnp.einsum("bnm,bmd->bnd", attn, g, precision=HI)
    out = jnp.einsum("bnd,dc->bnc", y, w4, precision=HI) + b4 + x_flat
    return jnp.transpose(out, (0, 2, 1)).reshape(bs, c, h, w)


if __name__ == "__main__":
    key = jax.random.PRNGKey(0)
    kx, kp = jax.random.split(key)

    # Primary small config (separate-weights moment path, single tile).
    bs, c, h, w = 2, 4, 16, 16
    x = jax.random.normal(kx, (bs, c, h, w), jnp.float32)
    params = init_params(kp, c)
    out = jax.block_until_ready(nlnn_dot(x, params))
    assert out.shape == (bs, c, h, w), out.shape
    ref = nlnn_dot_ref(x, params)
    # bf16 MXU operands with f32 accumulation vs a HIGHEST-precision reference.
    assert jnp.allclose(out, ref, rtol=2e-2, atol=2e-2), "mismatch (test 1)"

    # Non-128-divisible spatial (N=144 padded to 256, masked reduction) and
    # 8-aligned ch -> fused phi|g projection path.
    k2x, k2p = jax.random.split(jax.random.PRNGKey(1))
    x2 = jax.random.normal(k2x, (1, 16, 12, 12), jnp.float32)
    p2 = init_params(k2p, 16)
    out2 = jax.block_until_ready(nlnn_dot(x2, p2))
    ref2 = nlnn_dot_ref(x2, p2)
    assert jnp.allclose(out2, ref2, rtol=2e-2, atol=2e-2), "mismatch (test 2)"

    # Multi-tile reduction with split partial accumulators (forced small tile).
    k3x, k3p = jax.random.split(jax.random.PRNGKey(2))
    x3 = jax.random.normal(k3x, (1, 8, 32, 32), jnp.float32)
    p3 = init_params(k3p, 8)
    out3 = jax.block_until_ready(nlnn_dot(x3, p3, tile_n=128))
    ref3 = nlnn_dot_ref(x3, p3)
    assert jnp.allclose(out3, ref3, rtol=2e-2, atol=2e-2), "mismatch (test 3)"

    print("KERNEL_OK")
</pallas_src>

<mosaic_0001>
module attributes {stable_mosaic.version = 11 : i64} {
  func.func @kernel(%arg0: i32, %arg1: i32, %arg2: i32, %arg3: memref<1x4x256xf32, #tpu.memory_space<vmem>>, %arg4: memref<4x2xbf16, #tpu.memory_space<vmem>>, %arg5: memref<2x1xf32, #tpu.memory_space<vmem>>, %arg6: memref<4x2xbf16, #tpu.memory_space<vmem>>, %arg7: memref<2x1xf32, #tpu.memory_space<vmem>>, %arg8: memref<1x2x2xf32, #tpu.memory_space<vmem>>) attributes {dimension_semantics = [#tpu.dimension_semantics<parallel>, #tpu.dimension_semantics<parallel>, #tpu.dimension_semantics<arbitrary>], iteration_bounds = array<i64: 2, 1, 1>, scalar_prefetch = 0 : i64, scratch_operands = 0 : i64, tpu.core_type = #tpu.core_type<tc>, window_params = [{transform_indices = @transform_0, window_bounds = array<i64: 1, 4, 256>}, {pipeline_mode = #tpu.pipeline_mode<synchronous>, transform_indices = @transform_1, window_bounds = array<i64: 4, 2>}, {pipeline_mode = #tpu.pipeline_mode<synchronous>, transform_indices = @transform_2, window_bounds = array<i64: 2, 1>}, {pipeline_mode = #tpu.pipeline_mode<synchronous>, transform_indices = @transform_3, window_bounds = array<i64: 4, 2>}, {pipeline_mode = #tpu.pipeline_mode<synchronous>, transform_indices = @transform_4, window_bounds = array<i64: 2, 1>}, {transform_indices = @transform_5, window_bounds = array<i64: 1, 2, 2>}]} {
    %c0 = arith.constant 0 : index
    %c0_0 = arith.constant 0 : index
    %c0_1 = arith.constant 0 : index
    %0 = vector.load %arg3[%c0, %c0_0, %c0_1] : memref<1x4x256xf32, #tpu.memory_space<vmem>>, vector<1x4x256xf32>
    %1 = vector.shape_cast %0 : vector<1x4x256xf32> to vector<4x256xf32>
    %2 = arith.truncf %1 : vector<4x256xf32> to vector<4x256xbf16>
    %c0_2 = arith.constant 0 : index
    %c0_3 = arith.constant 0 : index
    %3 = vector.load %arg4[%c0_2, %c0_3] : memref<4x2xbf16, #tpu.memory_space<vmem>>, vector<4x2xbf16>
    %cst = arith.constant dense<0.000000e+00> : vector<2x256xf32>
    %4 = tpu.matmul %3, %2, %cst {dimension_numbers = #tpu.dot_dimension_numbers<[0], [0], [1], [1], [0, 1, 1, 1], [], []>} : vector<4x2xbf16>, vector<4x256xbf16>, vector<2x256xf32> -> vector<2x256xf32>
    %c0_4 = arith.constant 0 : index
    %c0_5 = arith.constant 0 : index
    %5 = vector.load %arg5[%c0_4, %c0_5] : memref<2x1xf32, #tpu.memory_space<vmem>>, vector<2x1xf32>
    %6 = vector.broadcast %5 : vector<2x1xf32> to vector<2x256xf32>
    %7 = arith.addf %4, %6 : vector<2x256xf32>
    %c0_6 = arith.constant 0 : index
    %c0_7 = arith.constant 0 : index
    %8 = vector.load %arg6[%c0_6, %c0_7] : memref<4x2xbf16, #tpu.memory_space<vmem>>, vector<4x2xbf16>
    %cst_8 = arith.constant dense<0.000000e+00> : vector<2x256xf32>
    %9 = tpu.matmul %8, %2, %cst_8 {dimension_numbers = #tpu.dot_dimension_numbers<[0], [0], [1], [1], [0, 1, 1, 1], [], []>} : vector<4x2xbf16>, vector<4x256xbf16>, vector<2x256xf32> -> vector<2x256xf32>
    %c0_9 = arith.constant 0 : index
    %c0_10 = arith.constant 0 : index
    %10 = vector.load %arg7[%c0_9, %c0_10] : memref<2x1xf32, #tpu.memory_space<vmem>>, vector<2x1xf32>
    %11 = vector.broadcast %10 : vector<2x1xf32> to vector<2x256xf32>
    %12 = arith.addf %9, %11 : vector<2x256xf32>
    %c0_i32 = arith.constant 0 : i32
    %13 = arith.cmpi eq, %arg2, %c0_i32 : i32
    %14 = arith.extui %13 : i1 to i32
    %c0_i32_11 = arith.constant 0 : i32
    %15 = arith.cmpi ne, %14, %c0_i32_11 : i32
    scf.if %15 {
      %cst_19 = arith.constant 0.000000e+00 : f32
      %25 = vector.broadcast %cst_19 : f32 to vector<2x2xf32>
      %c0_20 = arith.constant 0 : index
      %c0_21 = arith.constant 0 : index
      %c0_22 = arith.constant 0 : index
      %26 = vector.load %arg8[%c0_20, %c0_21, %c0_22] : memref<1x2x2xf32, #tpu.memory_space<vmem>>, vector<1x2x2xf32>
      %27 = vector.shape_cast %26 : vector<1x2x2xf32> to vector<2x2xf32>
      %28 = vector.shape_cast %25 : vector<2x2xf32> to vector<1x2x2xf32>
      tpu.vector_store %arg8[%c0_20, %c0_21, %c0_22], %28 {strides = array<i32>} : memref<1x2x2xf32, #tpu.memory_space<vmem>>, vector<1x2x2xf32>,
    } else {
    }
    %c0_12 = arith.constant 0 : index
    %c0_13 = arith.constant 0 : index
    %c0_14 = arith.constant 0 : index
    %16 = vector.load %arg8[%c0_12, %c0_13, %c0_14] : memref<1x2x2xf32, #tpu.memory_space<vmem>>, vector<1x2x2xf32>
    %17 = vector.shape_cast %16 : vector<1x2x2xf32> to vector<2x2xf32>
    %18 = arith.truncf %7 : vector<2x256xf32> to vector<2x256xbf16>
    %19 = arith.truncf %12 : vector<2x256xf32> to vector<2x256xbf16>
    %cst_15 = arith.constant dense<0.000000e+00> : vector<2x2xf32>
    %20 = tpu.matmul %18, %19, %cst_15 {dimension_numbers = #tpu.dot_dimension_numbers<[1], [1], [0], [0], [0, 0, 1, 0], [], []>} : vector<2x256xbf16>, vector<2x256xbf16>, vector<2x2xf32> -> vector<2x2xf32>
    %21 = arith.addf %17, %20 : vector<2x2xf32>
    %c0_16 = arith.constant 0 : index
    %c0_17 = arith.constant 0 : index
    %c0_18 = arith.constant 0 : index
    %22 = vector.load %arg8[%c0_16, %c0_17, %c0_18] : memref<1x2x2xf32, #tpu.memory_space<vmem>>, vector<1x2x2xf32>
    %23 = vector.shape_cast %22 : vector<1x2x2xf32> to vector<2x2xf32>
    %24 = vector.shape_cast %21 : vector<2x2xf32> to vector<1x2x2xf32>
    tpu.vector_store %arg8[%c0_16, %c0_17, %c0_18], %24 {strides = array<i32>} : memref<1x2x2xf32, #tpu.memory_space<vmem>>, vector<1x2x2xf32>,
    return
  }
  func.func @transform_0(%arg0: i32, %arg1: i32, %arg2: i32) -> (i32, i32, i32) {
    %c1_i32 = arith.constant 1 : i32
    %0 = arith.muli %arg1, %c1_i32 : i32
    %1 = arith.addi %0, %arg2 : i32
    %c0_i32 = arith.constant 0 : i32
    %c0_i32_0 = arith.constant 0 : i32
    return %arg0, %c0_i32, %1 : i32, i32, i32
  }
  func.func @transform_1(%arg0: i32, %arg1: i32, %arg2: i32) -> (i32, i32) {
    %c0_i32 = arith.constant 0 : i32
    %c0_i32_0 = arith.constant 0 : i32
    %c0_i32_1 = arith.constant 0 : i32
    return %c0_i32, %c0_i32_0 : i32, i32
  }
  func.func @transform_2(%arg0: i32, %arg1: i32, %arg2: i32) -> (i32, i32) {
    %c0_i32 = arith.constant 0 : i32
    %c0_i32_0 = arith.constant 0 : i32
    %c0_i32_1 = arith.constant 0 : i32
    return %c0_i32, %c0_i32_0 : i32, i32
  }
  func.func @transform_3(%arg0: i32, %arg1: i32, %arg2: i32) -> (i32, i32) {
    %c0_i32 = arith.constant 0 : i32
    %c0_i32_0 = arith.constant 0 : i32
    %c0_i32_1 = arith.constant 0 : i32
    return %c0_i32, %c0_i32_0 : i32, i32
  }
  func.func @transform_4(%arg0: i32, %arg1: i32, %arg2: i32) -> (i32, i32) {
    %c0_i32 = arith.constant 0 : i32
    %c0_i32_0 = arith.constant 0 : i32
    %c0_i32_1 = arith.constant 0 : i32
    return %c0_i32, %c0_i32_0 : i32, i32
  }
  func.func @transform_5(%arg0: i32, %arg1: i32, %arg2: i32) -> (i32, i32, i32) {
    %c1_i32 = arith.constant 1 : i32
    %0 = arith.muli %arg0, %c1_i32 : i32
    %1 = arith.addi %0, %arg1 : i32
    %c0_i32 = arith.constant 0 : i32
    %c0_i32_0 = arith.constant 0 : i32
    %c0_i32_1 = arith.constant 0 : i32
    return %1, %c0_i32, %c0_i32_0 : i32, i32, i32
  }
}

</mosaic_0001>

<llo_original>
// kernel: tpu_custom_call.1
$region0: #{tpu_custom_call.1}
  #allocation0 [shape = 'u32[]', space=smem, size = 0x4, offset = 0x4, fixed_abs, tag = 'smem constant byte address 0x4 - core index']
  #allocation1 [shape = 'u32[144,128]{1,0:T(1,128)}', space=vmem, size = 0x12000, scoped, tag = 'internal scratch']
  %s0 = inlined_call_operand.hbm [shape: f32[2,4,256], index: 0, kind: input, shape index: {}]
  %s1 = inlined_call_operand.vmem [shape: bf16[4,2], index: 1, kind: input, shape index: {}]
  %s2 = inlined_call_operand.vmem [shape: f32[2,1], index: 2, kind: input, shape index: {}]
  %s3 = inlined_call_operand.vmem [shape: bf16[4,2], index: 3, kind: input, shape index: {}]
  %s4 = inlined_call_operand.vmem [shape: f32[2,1], index: 4, kind: input, shape index: {}]
  %s5 = inlined_call_operand.hbm [shape: f32[2,2,2], index: 5, kind: output, shape index: {}]
  %s6 = sld [smem:[#allocation0]]
  $region61: #{tpu_custom_call.1} parent=0
    _
  %s8 = ssub.s32 1, %s6
  %s9 = scalar_select 0, %s8, %s6
  $region1: #{tpu_custom_call.1} parent=0
    #allocation2 [shape = 'u8[8192]{0}', space=vmem, size = 0x2000, scoped, tag = 'input window, operand 0']
    #allocation3 [shape = 's32[2]{0}', space=sflag, size = 0x8, scoped, tag = 'scoped memory for tpu_custom_call.1']
    #allocation4 [shape = 's32[2]{0}', space=sflag, size = 0x8, scoped, tag = 'scoped memory for tpu_custom_call.1']
    #allocation5 [shape = 'u8[2048]{0}', space=vmem, size = 0x800, scoped, tag = 'output window, operand 0']
    %10 = vsyncpa [#allocation3], 0
    %s11 = scalar_lea.sflag [#allocation3], 1
    %12 = vsyncpa %s11, 0
    %13 = vsyncpa [#allocation4], 0
    %s14 = scalar_lea.sflag [#allocation4], 1
    %15 = vsyncpa %s14, 0
    loop: start=0, step=1, limit=4
    $region2: #{tpu_custom_call.1} parent=1 // loop_pre_header
      _
    $region3: #{tpu_custom_call.1} parent=1 // loop_header
      %s17 = sphi 0, %s21
      %p18 = scmp.ge.s32.totalorder %s17, 4
      %s24 = sphi 0, %s43
      %s25 = sphi 0, %s39
      %s26 = sphi 0, %s35
      %s27 = sphi 0, %s24
      %s28 = sphi 0, %s25
      %s29 = sphi 0, %s26
      %s30 = sphi 0, %s27
      %s31 = sphi 0, %s28
      %s32 = sphi 0, %s29
      %s50 = sphi 0, %s52
      %s53 = sphi 0, %s50
      %s54 = sphi 0, %s53
      %s70 = sphi 0, %s54
      %s74 = sphi 0, %s74
      %s76 = sphi 0, %s74
      %s77 = sphi 0, %s76
      %s91 = sphi 0, %s77
      %s95 = sphi 0, %s95
      %s97 = sphi 0, %s95
      %s98 = sphi 0, %s97
      %s112 = sphi 0, %s98
      %s116 = sphi 0, %s116
      %s118 = sphi 0, %s116
      %s119 = sphi 0, %s118
      %s133 = sphi 0, %s119
      %s137 = sphi 0, %s137
      %s139 = sphi 0, %s137
      %s140 = sphi 0, %s139
      %s154 = sphi 0, %s140
      %s162 = sphi 0, %s164
      %s165 = sphi 0, %s162
      %s166 = sphi 0, %s165
      %s182 = sphi 0, %s166
    $region4: #{tpu_custom_call.1} parent=1 // loop_header_branch
      %20 = sbr.rel (%p18) target = $region8
    $region5: #{tpu_custom_call.1} parent=1 // loop_body
      %s22 = ssub.s32 %s17, 1
      %s23 = ssub.s32 %s17, 2
      %s33 = sadd.s32 1, %s26
      %p34 = scmp.ge.s32.totalorder %s33, 1
      %s35 = scalar_select %p34, 0, %s33
      %s36 = sadd.s32 1, %s25
      %s37 = scalar_select %p34, %s36, %s25
      %p38 = scmp.ge.s32.totalorder %s37, 1
      %s39 = scalar_select %p38, 0, %s37
      %s40 = sadd.s32 1, %s24
      %s41 = scalar_select %p38, %s40, %s24
      %p42 = scmp.ge.s32.totalorder %s41, 2
      %s43 = scalar_select %p42, 0, %s41
      %s44 = sadd.s32 %s25, %s26
      %s45 = sadd.s32 %s39, %s35
      %s46 = ssub.s32 %s24, %s43
      %s47 = ssub.s32 %s44, %s45
      %s48 = sor.u32 %s46, %s47
      %p49 = scmp.eq.s32.totalorder %s48, 0
      %s51 = sadd.s32 %s50, 1
      %s52 = scalar_select %p49, %s50, %s51
      %p55 = pneg %p49
      %p56 = scmp.eq.s32.totalorder %s17, 1
      %p57 = por %p55, %p56
      %p58 = scmp.ne.s32.totalorder %s50, %s53
      %p59 = scmp.eq.s32.totalorder %s17, 0
      %p60 = por %p58, %p59
      %p61 = scmp.ne.s32.totalorder %s50, %s53
      %p62 = scmp.eq.s32.totalorder %s22, 1
      %p63 = por %p61, %p62
      %p64 = scmp.ne.s32.totalorder %s53, %s54
      %p65 = scmp.eq.s32.totalorder %s22, 0
      %p66 = por %p64, %p65
      %p67 = scmp.ne.s32.totalorder %s53, %s54
      %p68 = scmp.eq.s32.totalorder %s23, 1
      %p69 = por %p67, %p68
      %p71 = scmp.ne.s32.totalorder %s54, %s70
      %p72 = scmp.eq.s32.totalorder %s23, 0
      %p73 = por %p71, %p72
      %s75 = sadd.s32 %s74, 1
      %p78 = scmp.eq.s32.totalorder %s17, 1
      %p79 = scmp.ne.s32.totalorder %s74, %s76
      %p80 = scmp.eq.s32.totalorder %s17, 0
      %p81 = por %p79, %p80
      %p82 = scmp.ne.s32.totalorder %s74, %s76
      %p83 = scmp.eq.s32.totalorder %s22, 1
      %p84 = por %p82, %p83
      %p85 = scmp.ne.s32.totalorder %s76, %s77
      %p86 = scmp.eq.s32.totalorder %s22, 0
      %p87 = por %p85, %p86
      %p88 = scmp.ne.s32.totalorder %s76, %s77
      %p89 = scmp.eq.s32.totalorder %s23, 1
      %p90 = por %p88, %p89
      %p92 = scmp.ne.s32.totalorder %s77, %s91
      %p93 = scmp.eq.s32.totalorder %s23, 0
      %p94 = por %p92, %p93
      %s96 = sadd.s32 %s95, 1
      %p99 = scmp.eq.s32.totalorder %s17, 1
      %p100 = scmp.ne.s32.totalorder %s95, %s97
      %p101 = scmp.eq.s32.totalorder %s17, 0
      %p102 = por %p100, %p101
      %p103 = scmp.ne.s32.totalorder %s95, %s97
      %p104 = scmp.eq.s32.totalorder %s22, 1
      %p105 = por %p103, %p104
      %p106 = scmp.ne.s32.totalorder %s97, %s98
      %p107 = scmp.eq.s32.totalorder %s22, 0
      %p108 = por %p106, %p107
      %p109 = scmp.ne.s32.totalorder %s97, %s98
      %p110 = scmp.eq.s32.totalorder %s23, 1
      %p111 = por %p109, %p110
      %p113 = scmp.ne.s32.totalorder %s98, %s112
      %p114 = scmp.eq.s32.totalorder %s23, 0
      %p115 = por %p113, %p114
      %s117 = sadd.s32 %s116, 1
      %p120 = scmp.eq.s32.totalorder %s17, 1
      %p121 = scmp.ne.s32.totalorder %s116, %s118
      %p122 = scmp.eq.s32.totalorder %s17, 0
      %p123 = por %p121, %p122
      %p124 = scmp.ne.s32.totalorder %s116, %s118
      %p125 = scmp.eq.s32.totalorder %s22, 1
      %p126 = por %p124, %p125
      %p127 = scmp.ne.s32.totalorder %s118, %s119
      %p128 = scmp.eq.s32.totalorder %s22, 0
      %p129 = por %p127, %p128
      %p130 = scmp.ne.s32.totalorder %s118, %s119
      %p131 = scmp.eq.s32.totalorder %s23, 1
      %p132 = por %p130, %p131
      %p134 = scmp.ne.s32.totalorder %s119, %s133
      %p135 = scmp.eq.s32.totalorder %s23, 0
      %p136 = por %p134, %p135
      %s138 = sadd.s32 %s137, 1
      %p141 = scmp.eq.s32.totalorder %s17, 1
      %p142 = scmp.ne.s32.totalorder %s137, %s139
      %p143 = scmp.eq.s32.totalorder %s17, 0
      %p144 = por %p142, %p143
      %p145 = scmp.ne.s32.totalorder %s137, %s139
      %p146 = scmp.eq.s32.totalorder %s22, 1
      %p147 = por %p145, %p146
      %p148 = scmp.ne.s32.totalorder %s139, %s140
      %p149 = scmp.eq.s32.totalorder %s22, 0
      %p150 = por %p148, %p149
      %p151 = scmp.ne.s32.totalorder %s139, %s140
      %p152 = scmp.eq.s32.totalorder %s23, 1
      %p153 = por %p151, %p152
      %p155 = scmp.ne.s32.totalorder %s140, %s154
      %p156 = scmp.eq.s32.totalorder %s23, 0
      %p157 = por %p155, %p156
      %s158 = sadd.s32 %s24, %s25
      %s159 = sadd.s32 %s43, %s39
      %s160 = ssub.s32 %s158, %s159
      %p161 = scmp.eq.s32.totalorder %s160, 0
      %s163 = sadd.s32 %s162, 1
      %s164 = scalar_select %p161, %s162, %s163
      %p167 = pneg %p161
      %p168 = scmp.eq.s32.totalorder %s17, 1
      %p169 = por %p167, %p168
      %p170 = scmp.ne.s32.totalorder %s162, %s165
      %p171 = scmp.eq.s32.totalorder %s17, 0
      %p172 = por %p170, %p171
      %p173 = scmp.ne.s32.totalorder %s162, %s165
      %p174 = scmp.eq.s32.totalorder %s22, 1
      %p175 = por %p173, %p174
      %p176 = scmp.ne.s32.totalorder %s165, %s166
      %p177 = scmp.eq.s32.totalorder %s22, 0
      %p178 = por %p176, %p177
      %p179 = scmp.ne.s32.totalorder %s165, %s166
      %p180 = scmp.eq.s32.totalorder %s23, 1
      %p181 = por %p179, %p180
      %p183 = scmp.ne.s32.totalorder %s166, %s182
      %p184 = scmp.eq.s32.totalorder %s23, 0
      %p185 = por %p183, %p184
      %p186 = scmp.le.s32.totalorder 1, %s17
      %p187 = scmp.lt.s32.totalorder %s17, 3
      %p188 = pnand %p186, %p187
      %p189 = pneg %p188
      // Predicated region
      $region9: #{tpu_custom_call.1} parent=5 // pred_check
        _
      $region10: #{tpu_custom_call.1} parent=5 // pred_check_branch
        %191 = sbr.rel (%p188) target = $region12
      $region11: #{tpu_custom_call.1} parent=5 // pred_region
        %s192 = ssub.s32 %s17, 1
        // Predicated region
        $region13: #{tpu_custom_call.1} parent=11 // pred_check
          %p193 = pneg %p87
        $region14: #{tpu_custom_call.1} parent=11 // pred_check_branch
          %195 = sbr.rel (%p193) target = $region16
        $region15: #{tpu_custom_call.1} parent=11 // pred_region
          _
        $region16: #{tpu_custom_call.1} parent=11 // pred_fallthru
          _
        // Predicated region
        $region17: #{tpu_custom_call.1} parent=11 // pred_check
          %p196 = pneg %p108
        $region18: #{tpu_custom_call.1} parent=11 // pred_check_branch
          %198 = sbr.rel (%p196) target = $region20
        $region19: #{tpu_custom_call.1} parent=11 // pred_region
          _
        $region20: #{tpu_custom_call.1} parent=11 // pred_fallthru
          _
        // Predicated region
        $region21: #{tpu_custom_call.1} parent=11 // pred_check
          %p199 = pneg %p129
        $region22: #{tpu_custom_call.1} parent=11 // pred_check_branch
          %201 = sbr.rel (%p199) target = $region24
        $region23: #{tpu_custom_call.1} parent=11 // pred_region
          _
        $region24: #{tpu_custom_call.1} parent=11 // pred_fallthru
          _
        // Predicated region
        $region25: #{tpu_custom_call.1} parent=11 // pred_check
          %p202 = pneg %p150
        $region26: #{tpu_custom_call.1} parent=11 // pred_check_branch
          %204 = sbr.rel (%p202) target = $region28
        $region27: #{tpu_custom_call.1} parent=11 // pred_region
          _
        $region28: #{tpu_custom_call.1} parent=11 // pred_fallthru
          _
      $region12: #{tpu_custom_call.1} parent=5 // pred_fallthru
        _
      %p205 = scmp.lt.s32.totalorder %s17, 2
      // Predicated region
      $region29: #{tpu_custom_call.1} parent=5 // pred_check
        %p206 = pneg %p205
      $region30: #{tpu_custom_call.1} parent=5 // pred_check_branch
        %208 = sbr.rel (%p206) target = $region32
      $region31: #{tpu_custom_call.1} parent=5 // pred_region
        // Predicated region
        $region33: #{tpu_custom_call.1} parent=31 // pred_check
          %p209 = pneg %p60
        $region34: #{tpu_custom_call.1} parent=31 // pred_check_branch
          %211 = sbr.rel (%p209) target = $region36
        $region35: #{tpu_custom_call.1} parent=31 // pred_region
          %s212 = sand.u32 %s50, 1
          %s213 = scalar_lea.sflag [#allocation3], %s212
          %s214 = sand.u32 %s50, 1
          %s215 = smul.addr %s214, 8
          %s216 = scalar_lea.vmem [#allocation2], %s215
          %s217 = sadd.s32 %s25, %s26
          %s218 = smul.u32 2, %s217
          %s220 = ssub.s32 128, 128
          %221 = vsyncadd %s213, %s220
          %s222 = smul.addr %s24, 2
          %s223 = sadd.s32 %s218, %s222
          %s224 = smul.addr %s223, 64
          %s225 = scalar_lea.hbm %s0, %s224
          %s227 = sshll.u32 %s216, 4
          %s228 = int_to_ptr.vmem [resolvable:$true] %s227
          %230 = dma.hbm_to_vmem [thread:$0]  %s225, 128, %s228, %s213
        $region36: #{tpu_custom_call.1} parent=31 // pred_fallthru
          _
      $region32: #{tpu_custom_call.1} parent=5 // pred_fallthru
        _
      %p231 = scmp.le.s32.totalorder 1, %s17
      %p232 = scmp.lt.s32.totalorder %s17, 3
      %p233 = pnand %p231, %p232
      %p234 = pneg %p233
      // Predicated region
      $region37: #{tpu_custom_call.1} parent=5 // pred_check
        _
      $region38: #{tpu_custom_call.1} parent=5 // pred_check_branch
        %236 = sbr.rel (%p233) target = $region40
      $region39: #{tpu_custom_call.1} parent=5 // pred_region
        %s237 = ssub.s32 %s17, 1
        %s238 = sand.u32 %s53, 1
        %s239 = scalar_lea.sflag [#allocation3], %s238
        %s240 = sand.u32 %s53, 1
        %s241 = smul.addr %s240, 8
        %s242 = scalar_lea.vmem [#allocation2], %s241
        // Predicated region
        $region41: #{tpu_custom_call.1} parent=39 // pred_check
          %p243 = pneg %p66
        $region42: #{tpu_custom_call.1} parent=39 // pred_check_branch
          %245 = sbr.rel (%p243) target = $region44
        $region43: #{tpu_custom_call.1} parent=39 // pred_region
          %246 = dma.done %s239, 128
        $region44: #{tpu_custom_call.1} parent=39 // pred_fallthru
          _
        %s247 = sand.u32 %s53, 1
        %s248 = scalar_lea.sflag [#allocation3], %s247
        %s249 = sand.u32 %s53, 1
        %s250 = smul.addr %s249, 8
        %s251 = scalar_lea.vmem [#allocation2], %s250
        %p252 = pneg %p66
        %p253 = pneg %p63
        %p254 = pneg %p87
        %p255 = pneg %p84
        %p256 = pneg %p108
        %p257 = pneg %p105
        %p258 = pneg %p129
        %p259 = pneg %p126
        %p260 = pneg %p150
        %p261 = pneg %p147
        %p262 = pneg %p178
        %p263 = pneg %p175
        %s264 = sand.u32 %s165, 1
        %s265 = scalar_lea.sflag [#allocation4], %s264
        %s266 = sand.u32 %s165, 1
        %s267 = smul.addr %s266, 2
        %s268 = scalar_lea.vmem [#allocation5], %s267
        %s269 = sadd.s32 %s28, %s29
        %s270 = smul.u32 2, %s269
        %s271 = sadd.s32 %s27, %s28
        %v273 = vld [vmem:[%s242] sm:$0xff]
        %v275 = vcombine.high %v273, %v273
        %v277 = vpack.c.bf16 %v273, %v273
        %v278 = vpack.c.bf16 %v275, %v275
        %v279 = vld [vmem:[%s1] sm:$0x3]
        %v280 = vld [vmem:[%s2] sm:$0x3]
        %282 = vset.pattern.permute.xlu0 0
        %283 = vperm.xlu0 %282, %v280
        %v284 = vpop.permute.xlu0 %283
        %286 = vxpose.xlu0.c.b16.start [1/8] %v279, 128
        %287 = vxpose.xlu0.c.b16.cont [2/8] 0, 128
        %288 = vxpose.xlu0.c.b16.cont [3/8] 0, 128
        %289 = vxpose.xlu0.c.b16.cont [4/8] 0, 128
        %290 = vxpose.xlu0.c.b16.cont [5/8] 0, 128
        %291 = vxpose.xlu0.c.b16.cont [6/8] 0, 128
        %292 = vxpose.xlu0.c.b16.cont [7/8] 0, 128
        %293 = vxpose.xlu0.c.b16.end [8/8] 0, 128
        %v294 = vpop.trf.xlu0
        %v295 = vpop.trf.xlu0
        %v296 = vpop.trf.xlu0
        %v297 = vpop.trf.xlu0
        %v298 = vpop.trf.xlu0
        %v299 = vpop.trf.xlu0
        %v300 = vpop.trf.xlu0
        %v301 = vpop.trf.xlu0
        %vm302 = vcmask 31744
        %v304 = vsel %vm302, %v294, 0
        %vm306 = vcmask 1041408
        %v308 = vsel %vm306, %v277, 0
        %v311 = vsel %vm306, %v278, 0
        %313 = vmatprep.subr.bf16.mxu0 %v311
        %314 = vmatpush1.bf16.msra.mxu0 %v308
        %315 = vmatprep.subr.bf16.mxu0 0
        %316 = vmatpush1.bf16.msra.mxu0 0
        %317 = vmatprep.subr.bf16.mxu0 0
        %318 = vmatpush1.bf16.msra.mxu0 0
        %319 = vmatprep.subr.bf16.mxu0 0
        %320 = vmatpush1.bf16.msra.mxu0 0
        %321 = vmatprep.subr.bf16.mxu0 0
        %322 = vmatpush1.bf16.msra.mxu0 0
        %323 = vmatprep.subr.bf16.mxu0 0
        %324 = vmatpush1.bf16.msra.mxu0 0
        %325 = vmatprep.subr.bf16.mxu0 0
        %326 = vmatpush1.bf16.msra.mxu0 0
        %327 = vmatprep.subr.bf16.mxu0 0
        %328 = vmatpush1.bf16.msra.mxu0 0
        %329 = vmatprep.subr.bf16.mxu0 0
        %330 = vmatpush1.bf16.msra.mxu0 0
        %331 = vmatprep.subr.bf16.mxu0 0
        %332 = vmatpush1.bf16.msra.mxu0 0
        %333 = vmatprep.subr.bf16.mxu0 0
        %334 = vmatpush1.bf16.msra.mxu0 0
        %335 = vmatprep.subr.bf16.mxu0 0
        %336 = vmatpush1.bf16.msra.mxu0 0
        %337 = vmatprep.subr.bf16.mxu0 0
        %338 = vmatpush1.bf16.msra.mxu0 0
        %339 = vmatprep.subr.bf16.mxu0 0
        %340 = vmatpush1.bf16.msra.mxu0 0
        %341 = vmatprep.subr.bf16.mxu0 0
        %342 = vmatpush1.bf16.msra.mxu0 0
        %343 = vmatprep.subr.bf16.mxu0 0
        %344 = vmatpush1.bf16.msra.mxu0 0
        %345 = vmatprep.mubr.bf16.mxu0 0
        %346 = vmatmul.mubr.bf16.gmra.mrb[0].mxu0 %v304
        %v347 = vpop.f32.mrb[0].mxu0
        %v348 = vadd.f32 %v284, %v347
        %v349 = vpop.f32.mrb[0].mxu0
        %v350 = vadd.f32 %v284, %v349
        %v351 = vpop.f32.mrb[0].mxu0
        %v352 = vpop.f32.mrb[0].mxu0
        %353 = vdwg.mxu0
        %v354 = vld [vmem:[%s3] sm:$0x3]
        %v355 = vld [vmem:[%s4] sm:$0x3]
        %357 = vset.pattern.permute.xlu0 0
        %358 = vperm.xlu0 %357, %v355
        %v359 = vpop.permute.xlu0 %358
        %361 = vxpose.xlu0.c.b16.start [1/8] %v354, 128
        %362 = vxpose.xlu0.c.b16.cont [2/8] 0, 128
        %363 = vxpose.xlu0.c.b16.cont [3/8] 0, 128
        %364 = vxpose.xlu0.c.b16.cont [4/8] 0, 128
        %365 = vxpose.xlu0.c.b16.cont [5/8] 0, 128
        %366 = vxpose.xlu0.c.b16.cont [6/8] 0, 128
        %367 = vxpose.xlu0.c.b16.cont [7/8] 0, 128
        %368 = vxpose.xlu0.c.b16.end [8/8] 0, 128
        %v369 = vpop.trf.xlu0
        %v370 = vpop.trf.xlu0
        %v371 = vpop.trf.xlu0
        %v372 = vpop.trf.xlu0
        %v373 = vpop.trf.xlu0
        %v374 = vpop.trf.xlu0
        %v375 = vpop.trf.xlu0
        %v376 = vpop.trf.xlu0
        %v378 = vsel %vm302, %v369, 0
        %380 = vmatprep.subr.bf16.mxu0 %v311
        %381 = vmatpush1.bf16.msra.mxu0 %v308
        %382 = vmatprep.subr.bf16.mxu0 0
        %383 = vmatpush1.bf16.msra.mxu0 0
        %384 = vmatprep.subr.bf16.mxu0 0
        %385 = vmatpush1.bf16.msra.mxu0 0
        %386 = vmatprep.subr.bf16.mxu0 0
        %387 = vmatpush1.bf16.msra.mxu0 0
        %388 = vmatprep.subr.bf16.mxu0 0
        %389 = vmatpush1.bf16.msra.mxu0 0
        %390 = vmatprep.subr.bf16.mxu0 0
        %391 = vmatpush1.bf16.msra.mxu0 0
        %392 = vmatprep.subr.bf16.mxu0 0
        %393 = vmatpush1.bf16.msra.mxu0 0
        %394 = vmatprep.subr.bf16.mxu0 0
        %395 = vmatpush1.bf16.msra.mxu0 0
        %396 = vmatprep.subr.bf16.mxu0 0
        %397 = vmatpush1.bf16.msra.mxu0 0
        %398 = vmatprep.subr.bf16.mxu0 0
        %399 = vmatpush1.bf16.msra.mxu0 0
        %400 = vmatprep.subr.bf16.mxu0 0
        %401 = vmatpush1.bf16.msra.mxu0 0
        %402 = vmatprep.subr.bf16.mxu0 0
        %403 = vmatpush1.bf16.msra.mxu0 0
        %404 = vmatprep.subr.bf16.mxu0 0
        %405 = vmatpush1.bf16.msra.mxu0 0
        %406 = vmatprep.subr.bf16.mxu0 0
        %407 = vmatpush1.bf16.msra.mxu0 0
        %408 = vmatprep.subr.bf16.mxu0 0
        %409 = vmatpush1.bf16.msra.mxu0 0
        %410 = vmatprep.subr.bf16.mxu0 0
        %411 = vmatpush1.bf16.msra.mxu0 0
        %412 = vmatprep.mubr.bf16.mxu0 0
        %413 = vmatmul.mubr.bf16.gmra.mrb[0].mxu0 %v378
        %v414 = vpop.f32.mrb[0].mxu0
        %v415 = vadd.f32 %v359, %v414
        %v416 = vpop.f32.mrb[0].mxu0
        %v417 = vadd.f32 %v359, %v416
        %v418 = vpop.f32.mrb[0].mxu0
        %v419 = vpop.f32.mrb[0].mxu0
        %420 = vdwg.mxu0
        %p421 = scmp.eq.s32.totalorder %s29, 0
        // Predicated region
        $region45: #{tpu_custom_call.1} parent=39 // pred_check
          %p422 = pneg %p421
        $region46: #{tpu_custom_call.1} parent=39 // pred_check_branch
          %424 = sbr.rel (%p422) target = $region48
        $region47: #{tpu_custom_call.1} parent=39 // pred_region
          %vm425 = vcmask 9216
          %426 = vst.msk [vmem:[%s268] sm:$0x3] %vm425, 0.0
        $region48: #{tpu_custom_call.1} parent=39 // pred_fallthru
          _
        %v427 = vld [vmem:[%s268] sm:$0x3]
        %v428 = vpack.c.bf16 %v348, %v348
        %v429 = vpack.c.bf16 %v350, %v350
        %v430 = vpack.c.bf16 %v415, %v415
        %v431 = vpack.c.bf16 %v417, %v417
        %432 = vmatprep.subr.bf16.mxu0 %v431
        %433 = vmatpush1.bf16.xpose.msra.mxu0 %v430
        %434 = vmatprep.subr.bf16.mxu0 0
        %435 = vmatpush1.bf16.xpose.msra.mxu0 0
        %436 = vmatprep.subr.bf16.mxu0 0
        %437 = vmatpush1.bf16.xpose.msra.mxu0 0
        %438 = vmatprep.subr.bf16.mxu0 0
        %439 = vmatpush1.bf16.xpose.msra.mxu0 0
        %440 = vmatprep.subr.bf16.mxu0 0
        %441 = vmatpush1.bf16.xpose.msra.mxu0 0
        %442 = vmatprep.subr.bf16.mxu0 0
        %443 = vmatpush1.bf16.xpose.msra.mxu0 0
        %444 = vmatprep.subr.bf16.mxu0 0
        %445 = vmatpush1.bf16.xpose.msra.mxu0 0
        %446 = vmatprep.subr.bf16.mxu0 0
        %447 = vmatpush1.bf16.xpose.msra.mxu0 0
        %448 = vmatprep.subr.bf16.mxu0 0
        %449 = vmatpush1.bf16.xpose.msra.mxu0 0
        %450 = vmatprep.subr.bf16.mxu0 0
        %451 = vmatpush1.bf16.xpose.msra.mxu0 0
        %452 = vmatprep.subr.bf16.mxu0 0
        %453 = vmatpush1.bf16.xpose.msra.mxu0 0
        %454 = vmatprep.subr.bf16.mxu0 0
        %455 = vmatpush1.bf16.xpose.msra.mxu0 0
        %456 = vmatprep.subr.bf16.mxu0 0
        %457 = vmatpush1.bf16.xpose.msra.mxu0 0
        %458 = vmatprep.subr.bf16.mxu0 0
        %459 = vmatpush1.bf16.xpose.msra.mxu0 0
        %460 = vmatprep.subr.bf16.mxu0 0
        %461 = vmatpush1.bf16.xpose.msra.mxu0 0
        %462 = vmatprep.subr.bf16.mxu0 0
        %463 = vmatpush1.bf16.xpose.msra.mxu0 0
        %464 = vmatprep.mubr.bf16.mxu0 %v429
        %465 = vmatmul.mubr.bf16.gmra.mrb[0].mxu0 %v428
        %v466 = vpop.f32.mrb[0].mxu0
        %v467 = vadd.f32 0.0, %v466
        %v468 = vpop.f32.mrb[0].mxu0
        %v469 = vpop.f32.mrb[0].mxu0
        %v470 = vpop.f32.mrb[0].mxu0
        %471 = vdwg.mxu0
        %v472 = vadd.f32 %v427, %v467
        %vm473 = vcmask 9216
        %474 = vst.msk [vmem:[%s268] sm:$0x3] %vm473, %v472
        %s475 = sand.u32 %s165, 1
        %s476 = scalar_lea.sflag [#allocation4], %s475
        %s477 = sand.u32 %s165, 1
        %s478 = smul.addr %s477, 2
        %s479 = scalar_lea.vmem [#allocation5], %s478
        // Predicated region
        $region49: #{tpu_custom_call.1} parent=39 // pred_check
          %p480 = pneg %p175
        $region50: #{tpu_custom_call.1} parent=39 // pred_check_branch
          %482 = sbr.rel (%p480) target = $region52
        $region51: #{tpu_custom_call.1} parent=39 // pred_region
          %s483 = sadd.s32 %s27, %s28
          %s485 = ssub.s32 32, 32
          %486 = vsyncadd %s476, %s485
          %s487 = smul.addr %s483, 32
          %s488 = scalar_lea.hbm %s5, %s487
          %s490 = sshll.u32 %s479, 4
          %s491 = int_to_ptr.vmem [resolvable:$true] %s490
          %493 = dma.vmem_to_hbm [thread:$0]  %s491, 32, %s488, %s476
        $region52: #{tpu_custom_call.1} parent=39 // pred_fallthru
          _
      $region40: #{tpu_custom_call.1} parent=5 // pred_fallthru
        _
      %p494 = scmp.le.s32.totalorder 2, %s17
      // Predicated region
      $region53: #{tpu_custom_call.1} parent=5 // pred_check
        %p495 = pneg %p494
      $region54: #{tpu_custom_call.1} parent=5 // pred_check_branch
        %497 = sbr.rel (%p495) target = $region56
      $region55: #{tpu_custom_call.1} parent=5 // pred_region
        %s498 = ssub.s32 %s17, 2
        // Predicated region
        $region57: #{tpu_custom_call.1} parent=55 // pred_check
          %p499 = pneg %p181
        $region58: #{tpu_custom_call.1} parent=55 // pred_check_branch
          %501 = sbr.rel (%p499) target = $region60
        $region59: #{tpu_custom_call.1} parent=55 // pred_region
          %s502 = sand.u32 %s166, 1
          %s503 = scalar_lea.sflag [#allocation4], %s502
          %s504 = sand.u32 %s166, 1
          %s505 = smul.addr %s504, 2
          %s506 = scalar_lea.vmem [#allocation5], %s505
          %507 = dma.done %s503, 32
        $region60: #{tpu_custom_call.1} parent=55 // pred_fallthru
          _
      $region56: #{tpu_custom_call.1} parent=5 // pred_fallthru
        _
    $region6: #{tpu_custom_call.1} parent=1 // loop_footer
      %s21 = sadd.s32 1, %s17
    $region7: #{tpu_custom_call.1} parent=1 // loop_footer_branch
      %16 = sbr.rel target = $region3
    $region8: #{tpu_custom_call.1} parent=1 // loop_exit
      _
    %508 = vsyncpa [#allocation3], 1
    %s509 = scalar_lea.sflag [#allocation3], 1
    %510 = vsyncpa %s509, 1
    %511 = vsyncpa [#allocation4], 1
    %s512 = scalar_lea.sflag [#allocation4], 1
    %513 = vsyncpa %s512, 1

</llo_original>
